<compile_context>
chip_gen: v6e
topology: v6e:2x2x1
jax: 0.10.0
libtpu: 0.0.40
codegen_flags: <defaults>
</compile_context>

<pallas_src>
import jax
import jax.numpy as jnp
from jax.experimental import pallas as pl
from jax.experimental.pallas import tpu as pltpu

# TODO(synk): the `hate_bert` transformer encoder (AutoModel 'GroNLP/hateBERT')
# has no clean single-kernel Pallas equivalent here; its last_hidden_state is
# replaced by a deterministic synthetic tensor of the same shape.


def _round_up(x: int, m: int) -> int:
    return (x + m - 1) // m * m


def folded_head_kernel(x_ref, w_ref, b_ref, o_ref, acc_ref):
    """y = x @ W + b, K-tiled reduction with resident f32 accumulator.

    grid = (M_pad // tm  ["parallel"],  K_pad // tk  ["arbitrary", reduction])
      x_ref  : (tm, tk) bf16   streamed over (m, k)
      w_ref  : (tk, N)  bf16   streamed over k
      b_ref  : (1,  N)  f32    resident
      o_ref  : (tm, N)  f32    written once, on the last K step
      acc_ref: (tm, N)  f32    VMEM scratch accumulator
    """
    k = pl.program_id(1)

    @pl.when(k == 0)
    def _init():
        acc_ref[...] = jnp.zeros_like(acc_ref)

    # bf16 x bf16 -> f32 accumulation: native MXU path on v5e/v6e/v7x.
    acc_ref[...] += jnp.dot(x_ref[...], w_ref[...],
                            preferred_element_type=jnp.float32)

    @pl.when(k == pl.num_programs(1) - 1)
    def _finalize():
        # NOTE: output last dim is the true num_outputs (e.g. 4), not padded to
        # 128 lanes: after folding, lane-padding the output would also pad the
        # folded weight's last dim and multiply streamed weight bytes ~32x,
        # which is a bad trade for one masked (tm, N) store per M tile.
        o_ref[...] = (acc_ref[...] + b_ref[...]).astype(o_ref.dtype)


def net_forward(bert_last_hidden, folded_params):
    """Forward pass of `Net` (minus the BERT encoder, see TODO above).

    bert_last_hidden: (B, SEQ, HID) float32 — stand-in for hate_bert(x)[0]
    folded_params: {"w": (num_inputs, num_outputs) bf16, "b": (1, num_outputs) f32}
    """
    w = folded_params["w"]
    b = folded_params["b"]

    B = bert_last_hidden.shape[0]
    x = bert_last_hidden.reshape(B, -1)            # th.flatten(x, 1)
    K = x.shape[1]
    N = w.shape[1]
    assert w.shape[0] == K

    # M tile: at least 8 rows (sublane), up to 128; multiple M tiles shard
    # across the 2 TensorCores on v7x via the "parallel" axis.
    tm = min(_round_up(max(B, 8), 8), 128)
    # K tile: lane-aligned (multiple of 128); 512 keeps per-step DMAs large.
    # (Deeper pipeline_mode=pl.Buffered(3) on x is an option for v5e.)
    tk = 512 if K >= 512 else _round_up(K, 128)
    m_pad = _round_up(B, tm)
    k_pad = _round_up(K, tk)

    # bf16 activations + weights halve the dominant HBM traffic; zero-padding
    # is exact (padded rows are sliced off, padded K columns contribute 0).
    x = x.astype(jnp.bfloat16)
    if (m_pad, k_pad) != (B, K):
        x = jnp.pad(x, ((0, m_pad - B), (0, k_pad - K)))
    if k_pad != K:
        w = jnp.pad(w, ((0, k_pad - K), (0, 0)))

    grid = (m_pad // tm, k_pad // tk)

    cost = pl.CostEstimate(
        flops=2 * m_pad * k_pad * N,
        transcendentals=0,
        bytes_accessed=(x.size * x.dtype.itemsize
                        + w.size * w.dtype.itemsize * grid[0]
                        + b.size * b.dtype.itemsize
                        + m_pad * N * 4),
    )

    out = pl.pallas_call(
        folded_head_kernel,
        out_shape=jax.ShapeDtypeStruct((m_pad, N), jnp.float32),
        grid_spec=pltpu.PrefetchScalarGridSpec(
            num_scalar_prefetch=0,
            grid=grid,
            in_specs=[
                pl.BlockSpec((tm, tk), lambda m, k: (m, k)),   # x tile
                pl.BlockSpec((tk, N), lambda m, k: (k, 0)),    # folded W tile
                pl.BlockSpec((1, N), lambda m, k: (0, 0)),     # folded bias
            ],
            out_specs=pl.BlockSpec((tm, N), lambda m, k: (m, 0)),
            scratch_shapes=[pltpu.VMEM((tm, N), jnp.float32)],
        ),
        # No vmem_limit_bytes: footprint is a few hundred KiB; asking for
        # 64 MiB (all of v7x VMEM) starves double-buffering / compiler temps.
        compiler_params=pltpu.CompilerParams(
            dimension_semantics=("parallel", "arbitrary")),
        cost_estimate=cost,
    )(x, w, b)

    return out[:B]


def init_params(key, num_inputs, num_outputs):
    """Mirror the PyTorch module's three nn.Linear layers (default init)."""
    def linear(k, fan_in, fan_out):
        kw, kb = jax.random.split(k)
        bound = 1.0 / jnp.sqrt(fan_in)
        # stored as (in, out) so forward is x @ W (PyTorch stores (out, in))
        wgt = jax.random.uniform(kw, (fan_in, fan_out), jnp.float32, -bound, bound)
        bias = jax.random.uniform(kb, (1, fan_out), jnp.float32, -bound, bound)
        return wgt, bias

    k1, k2, k3 = jax.random.split(key, 3)
    w1, b1 = linear(k1, num_inputs, 512)        # fc1
    w2, b2 = linear(k2, 512, 128)               # fc2
    w3, b3 = linear(k3, 128, num_outputs)       # fully_connected
    return {"w1": w1, "b1": b1, "w2": w2, "b2": b2, "w3": w3, "b3": b3}


def fold_head_params(params):
    """Exactly collapse drop1 -> fc1 -> drop2 -> fc2 -> fully_connected.

    Dropout is the identity at inference and there is no activation between
    the Linear layers, so the whole head is a single affine map:
        W = W1 @ W2 @ W3,    b = (b1 @ W2 + b2) @ W3 + b3
    Done once at weight-load time, not in the per-token hot path.
    """
    hi = jax.lax.Precision.HIGHEST
    w = jnp.dot(jnp.dot(params["w1"], params["w2"], precision=hi),
                params["w3"], precision=hi)
    b = jnp.dot(jnp.dot(params["b1"], params["w2"], precision=hi) + params["b2"],
                params["w3"], precision=hi) + params["b3"]
    return {"w": w.astype(jnp.bfloat16), "b": b.astype(jnp.float32)}


if __name__ == "__main__":
    key = jax.random.PRNGKey(0)
    B, SEQ, HID = 2, 8, 32            # small shapes consistent with the forward
    num_inputs = SEQ * HID            # flattened BERT last_hidden_state features
    num_outputs = 4

    k_x, k_p = jax.random.split(key)
    # deterministic stand-in for hate_bert(x)[0]
    bert_last_hidden = jax.random.normal(k_x, (B, SEQ, HID), jnp.float32)
    params = init_params(k_p, num_inputs, num_outputs)
    folded = fold_head_params(params)

    out = net_forward(bert_last_hidden, folded)
    jax.block_until_ready(out)
    assert out.shape == (B, num_outputs) and out.dtype == jnp.float32

    # pure-JAX f32 reference of the original, UN-folded 3-Linear head
    hi = jax.lax.Precision.HIGHEST
    x_flat = bert_last_hidden.reshape(B, -1)
    h1 = jnp.dot(x_flat, params["w1"], precision=hi) + params["b1"]
    h2 = jnp.dot(h1, params["w2"], precision=hi) + params["b2"]
    ref = jnp.dot(h2, params["w3"], precision=hi) + params["b3"]
    # tolerance covers bf16 storage of x and the folded W (f32 accumulation)
    assert jnp.allclose(out, ref, atol=2e-2, rtol=2e-2)

    print("KERNEL_OK")
</pallas_src>

<mosaic_0001>
module attributes {stable_mosaic.version = 11 : i64} {
  func.func @folded_head_kernel(%arg0: i32, %arg1: i32, %arg2: memref<8x256xbf16, #tpu.memory_space<vmem>>, %arg3: memref<256x4xbf16, #tpu.memory_space<vmem>>, %arg4: memref<1x4xf32, #tpu.memory_space<vmem>>, %arg5: memref<8x4xf32, #tpu.memory_space<vmem>>, %arg6: memref<8x4xf32, #tpu.memory_space<vmem>>) attributes {dimension_semantics = [#tpu.dimension_semantics<parallel>, #tpu.dimension_semantics<arbitrary>], iteration_bounds = array<i64: 1, 1>, scalar_prefetch = 0 : i64, scratch_operands = 1 : i64, tpu.core_type = #tpu.core_type<tc>, window_params = [{transform_indices = @transform_0, window_bounds = array<i64: 8, 256>}, {transform_indices = @transform_1, window_bounds = array<i64: 256, 4>}, {pipeline_mode = #tpu.pipeline_mode<synchronous>, transform_indices = @transform_2, window_bounds = array<i64: 1, 4>}, {transform_indices = @transform_3, window_bounds = array<i64: 8, 4>}]} {
    %c0_i32 = arith.constant 0 : i32
    %0 = arith.cmpi eq, %arg1, %c0_i32 : i32
    %1 = arith.extui %0 : i1 to i32
    %c0_i32_0 = arith.constant 0 : i32
    %2 = arith.cmpi ne, %1, %c0_i32_0 : i32
    scf.if %2 {
      %cst_10 = arith.constant 0.000000e+00 : f32
      %12 = vector.broadcast %cst_10 : f32 to vector<8x4xf32>
      %c0_11 = arith.constant 0 : index
      %c0_12 = arith.constant 0 : index
      %13 = vector.load %arg6[%c0_11, %c0_12] : memref<8x4xf32, #tpu.memory_space<vmem>>, vector<8x4xf32>
      tpu.vector_store %arg6[%c0_11, %c0_12], %12 {strides = array<i32>} : memref<8x4xf32, #tpu.memory_space<vmem>>, vector<8x4xf32>,
    } else {
    }
    %c0 = arith.constant 0 : index
    %c0_1 = arith.constant 0 : index
    %3 = vector.load %arg6[%c0, %c0_1] : memref<8x4xf32, #tpu.memory_space<vmem>>, vector<8x4xf32>
    %c0_2 = arith.constant 0 : index
    %c0_3 = arith.constant 0 : index
    %4 = vector.load %arg2[%c0_2, %c0_3] : memref<8x256xbf16, #tpu.memory_space<vmem>>, vector<8x256xbf16>
    %c0_4 = arith.constant 0 : index
    %c0_5 = arith.constant 0 : index
    %5 = vector.load %arg3[%c0_4, %c0_5] : memref<256x4xbf16, #tpu.memory_space<vmem>>, vector<256x4xbf16>
    %cst = arith.constant dense<0.000000e+00> : vector<8x4xf32>
    %6 = tpu.matmul %4, %5, %cst {dimension_numbers = #tpu.dot_dimension_numbers<[1], [0], [0], [1], [0, 0, 1, 1], [], []>} : vector<8x256xbf16>, vector<256x4xbf16>, vector<8x4xf32> -> vector<8x4xf32>
    %7 = arith.addf %3, %6 : vector<8x4xf32>
    %c0_6 = arith.constant 0 : index
    %c0_7 = arith.constant 0 : index
    %8 = vector.load %arg6[%c0_6, %c0_7] : memref<8x4xf32, #tpu.memory_space<vmem>>, vector<8x4xf32>
    tpu.vector_store %arg6[%c0_6, %c0_7], %7 {strides = array<i32>} : memref<8x4xf32, #tpu.memory_space<vmem>>, vector<8x4xf32>,
    %c0_i32_8 = arith.constant 0 : i32
    %9 = arith.cmpi eq, %arg1, %c0_i32_8 : i32
    %10 = arith.extui %9 : i1 to i32
    %c0_i32_9 = arith.constant 0 : i32
    %11 = arith.cmpi ne, %10, %c0_i32_9 : i32
    scf.if %11 {
      %c0_10 = arith.constant 0 : index
      %c0_11 = arith.constant 0 : index
      %12 = vector.load %arg6[%c0_10, %c0_11] : memref<8x4xf32, #tpu.memory_space<vmem>>, vector<8x4xf32>
      %c0_12 = arith.constant 0 : index
      %c0_13 = arith.constant 0 : index
      %13 = vector.load %arg4[%c0_12, %c0_13] : memref<1x4xf32, #tpu.memory_space<vmem>>, vector<1x4xf32>
      %14 = vector.broadcast %13 : vector<1x4xf32> to vector<8x4xf32>
      %15 = arith.addf %12, %14 : vector<8x4xf32>
      %c0_14 = arith.constant 0 : index
      %c0_15 = arith.constant 0 : index
      %16 = vector.load %arg5[%c0_14, %c0_15] : memref<8x4xf32, #tpu.memory_space<vmem>>, vector<8x4xf32>
      tpu.vector_store %arg5[%c0_14, %c0_15], %15 {strides = array<i32>} : memref<8x4xf32, #tpu.memory_space<vmem>>, vector<8x4xf32>,
    } else {
    }
    return
  }
  func.func @transform_0(%arg0: i32, %arg1: i32) -> (i32, i32) {
    %c0_i32 = arith.constant 0 : i32
    return %arg0, %arg1 : i32, i32
  }
  func.func @transform_1(%arg0: i32, %arg1: i32) -> (i32, i32) {
    %c0_i32 = arith.constant 0 : i32
    %c0_i32_0 = arith.constant 0 : i32
    return %arg1, %c0_i32 : i32, i32
  }
  func.func @transform_2(%arg0: i32, %arg1: i32) -> (i32, i32) {
    %c0_i32 = arith.constant 0 : i32
    %c0_i32_0 = arith.constant 0 : i32
    %c0_i32_1 = arith.constant 0 : i32
    return %c0_i32, %c0_i32_0 : i32, i32
  }
  func.func @transform_3(%arg0: i32, %arg1: i32) -> (i32, i32) {
    %c0_i32 = arith.constant 0 : i32
    %c0_i32_0 = arith.constant 0 : i32
    return %arg0, %c0_i32 : i32, i32
  }
}

</mosaic_0001>

<llo_original>
// kernel: tpu_custom_call.1
$region0: #{tpu_custom_call.1}
  #allocation0 [shape = 'u32[]', space=smem, size = 0x4, offset = 0x4, fixed_abs, tag = 'smem constant byte address 0x4 - core index']
  #allocation1 [shape = 'u32[144,128]{1,0:T(1,128)}', space=vmem, size = 0x12000, scoped, tag = 'internal scratch']
  #allocation2 [shape = 'f32[8,4]{1,0:T(8,128)}', space=vmem, size = 0x1000, scoped, tag = 'scratch operand']
  %s0 = inlined_call_operand.vmem [shape: bf16[8,256], index: 0, kind: input, shape index: {}]
  %s1 = inlined_call_operand.vmem [shape: bf16[256,4], index: 1, kind: input, shape index: {}]
  %s2 = inlined_call_operand.vmem [shape: f32[1,4], index: 2, kind: input, shape index: {}]
  %s3 = inlined_call_operand.vmem [shape: f32[8,4], index: 3, kind: output, shape index: {}]
  %s4 = sld [smem:[#allocation0]]
  $region30: #{tpu_custom_call.1} parent=0
    _
  %s6 = ssub.s32 1, %s4
  %s7 = scalar_select 0, %s6, %s4
  // Predicated region
  $region2: #{tpu_custom_call.1} parent=0 // pred_check
    _
  $region3: #{tpu_custom_call.1} parent=0 // pred_check_branch
    %9 = sbr.rel (0) target = $region5
  $region4: #{tpu_custom_call.1} parent=0 // pred_region
    _
  $region5: #{tpu_custom_call.1} parent=0 // pred_fallthru
    _
  // Predicated region
  $region6: #{tpu_custom_call.1} parent=0 // pred_check
    _
  $region7: #{tpu_custom_call.1} parent=0 // pred_check_branch
    %11 = sbr.rel (0) target = $region9
  $region8: #{tpu_custom_call.1} parent=0 // pred_region
    _
  $region9: #{tpu_custom_call.1} parent=0 // pred_fallthru
    _
  // Predicated region
  $region10: #{tpu_custom_call.1} parent=0 // pred_check
    _
  $region11: #{tpu_custom_call.1} parent=0 // pred_check_branch
    %13 = sbr.rel (0) target = $region13
  $region12: #{tpu_custom_call.1} parent=0 // pred_region
    _
  $region13: #{tpu_custom_call.1} parent=0 // pred_fallthru
    _
  %p15 = scmp.eq.s32.totalorder 0, 0
  // Predicated region
  $region14: #{tpu_custom_call.1} parent=0 // pred_check
    %p16 = pneg %p15
  $region15: #{tpu_custom_call.1} parent=0 // pred_check_branch
    %18 = sbr.rel (%p16) target = $region17
  $region16: #{tpu_custom_call.1} parent=0 // pred_region
    %vm19 = vcmask 31744
    %20 = vst.msk [vmem:[#allocation2] sm:$0xff] %vm19, 0.0
  $region17: #{tpu_custom_call.1} parent=0 // pred_fallthru
    _
  %v21 = vld [vmem:[#allocation2] sm:$0xff]
  %v22 = vld [vmem:[%s0] sm:$0xff]
  %v23 = vld [vmem:[%s1] sm:$0xf]
  %v24 = vld [vmem:[%s1 + $0x4] sm:$0xf]
  %v25 = vld [vmem:[%s1 + $0x8] sm:$0xf]
  %v26 = vld [vmem:[%s1 + $0xc] sm:$0xf]
  %v27 = vld [vmem:[%s1 + $0x10] sm:$0xf]
  %v28 = vld [vmem:[%s1 + $0x14] sm:$0xf]
  %v29 = vld [vmem:[%s1 + $0x18] sm:$0xf]
  %v30 = vld [vmem:[%s1 + $0x1c] sm:$0xf]
  %v31 = vld [vmem:[%s1 + $0x20] sm:$0xf]
  %v32 = vld [vmem:[%s1 + $0x24] sm:$0xf]
  %v33 = vld [vmem:[%s1 + $0x28] sm:$0xf]
  %v34 = vld [vmem:[%s1 + $0x2c] sm:$0xf]
  %v35 = vld [vmem:[%s1 + $0x30] sm:$0xf]
  %v36 = vld [vmem:[%s1 + $0x34] sm:$0xf]
  %v37 = vld [vmem:[%s1 + $0x38] sm:$0xf]
  %v38 = vld [vmem:[%s1 + $0x3c] sm:$0xf]
  %v39 = vld [vmem:[%s1 + $0x40] sm:$0xf]
  %v40 = vld [vmem:[%s1 + $0x44] sm:$0xf]
  %v41 = vld [vmem:[%s1 + $0x48] sm:$0xf]
  %v42 = vld [vmem:[%s1 + $0x4c] sm:$0xf]
  %v43 = vld [vmem:[%s1 + $0x50] sm:$0xf]
  %v44 = vld [vmem:[%s1 + $0x54] sm:$0xf]
  %v45 = vld [vmem:[%s1 + $0x58] sm:$0xf]
  %v46 = vld [vmem:[%s1 + $0x5c] sm:$0xf]
  %v47 = vld [vmem:[%s1 + $0x60] sm:$0xf]
  %v48 = vld [vmem:[%s1 + $0x64] sm:$0xf]
  %v49 = vld [vmem:[%s1 + $0x68] sm:$0xf]
  %v50 = vld [vmem:[%s1 + $0x6c] sm:$0xf]
  %v51 = vld [vmem:[%s1 + $0x70] sm:$0xf]
  %v52 = vld [vmem:[%s1 + $0x74] sm:$0xf]
  %v53 = vld [vmem:[%s1 + $0x78] sm:$0xf]
  %v54 = vld [vmem:[%s1 + $0x7c] sm:$0xf]
  %v56 = vunpack.c.l.b16 %v22
  %v57 = vunpack.c.h.b16 %v22
  %v58 = vpack.c.b16 %v56, %v56
  %v59 = vpack.c.b16 %v57, %v57
  %v94 = vunpack.c.l.b16 %v23
  %v95 = vunpack.c.l.b16 %v24
  %v96 = vunpack.c.l.b16 %v25
  %v97 = vunpack.c.l.b16 %v26
  %v98 = vunpack.c.l.b16 %v27
  %v99 = vunpack.c.l.b16 %v28
  %v100 = vunpack.c.l.b16 %v29
  %v101 = vunpack.c.l.b16 %v30
  %v102 = vunpack.c.l.b16 %v31
  %v103 = vunpack.c.l.b16 %v32
  %v104 = vunpack.c.l.b16 %v33
  %v105 = vunpack.c.l.b16 %v34
  %v106 = vunpack.c.l.b16 %v35
  %v107 = vunpack.c.l.b16 %v36
  %v108 = vunpack.c.l.b16 %v37
  %v109 = vunpack.c.l.b16 %v38
  %v110 = vunpack.c.l.b16 %v39
  %v111 = vunpack.c.l.b16 %v40
  %v112 = vunpack.c.l.b16 %v41
  %v113 = vunpack.c.l.b16 %v42
  %v114 = vunpack.c.l.b16 %v43
  %v115 = vunpack.c.l.b16 %v44
  %v116 = vunpack.c.l.b16 %v45
  %v117 = vunpack.c.l.b16 %v46
  %v118 = vunpack.c.l.b16 %v47
  %v119 = vunpack.c.l.b16 %v48
  %v120 = vunpack.c.l.b16 %v49
  %v121 = vunpack.c.l.b16 %v50
  %v122 = vunpack.c.l.b16 %v51
  %v123 = vunpack.c.l.b16 %v52
  %v124 = vunpack.c.l.b16 %v53
  %v125 = vunpack.c.l.b16 %v54
  %v126 = vpack.c.b16 %v95, %v94
  %v127 = vpack.c.b16 %v97, %v96
  %v128 = vpack.c.b16 %v99, %v98
  %v129 = vpack.c.b16 %v101, %v100
  %v130 = vpack.c.b16 %v103, %v102
  %v131 = vpack.c.b16 %v105, %v104
  %v132 = vpack.c.b16 %v107, %v106
  %v133 = vpack.c.b16 %v109, %v108
  %v134 = vpack.c.b16 %v111, %v110
  %v135 = vpack.c.b16 %v113, %v112
  %v136 = vpack.c.b16 %v115, %v114
  %v137 = vpack.c.b16 %v117, %v116
  %v138 = vpack.c.b16 %v119, %v118
  %v139 = vpack.c.b16 %v121, %v120
  %v140 = vpack.c.b16 %v123, %v122
  %v141 = vpack.c.b16 %v125, %v124
  %158 = vmatprep.subr.bf16.mxu0 0
  %159 = vmatpush1.bf16.msra.mxu0 %v133
  %160 = vmatprep.subr.bf16.mxu0 0
  %161 = vmatpush1.bf16.msra.mxu0 %v132
  %162 = vmatprep.subr.bf16.mxu0 0
  %163 = vmatpush1.bf16.msra.mxu0 %v131
  %164 = vmatprep.subr.bf16.mxu0 0
  %165 = vmatpush1.bf16.msra.mxu0 %v130
  %166 = vmatprep.subr.bf16.mxu0 0
  %167 = vmatpush1.bf16.msra.mxu0 %v129
  %168 = vmatprep.subr.bf16.mxu0 0
  %169 = vmatpush1.bf16.msra.mxu0 %v128
  %170 = vmatprep.subr.bf16.mxu0 0
  %171 = vmatpush1.bf16.msra.mxu0 %v127
  %172 = vmatprep.subr.bf16.mxu0 0
  %173 = vmatpush1.bf16.msra.mxu0 %v126
  %174 = vmatprep.subr.bf16.mxu0 0
  %175 = vmatpush2.bf16.msra.mxu0 %v141
  %176 = vmatprep.subr.bf16.mxu0 0
  %177 = vmatpush2.bf16.msra.mxu0 %v140
  %178 = vmatprep.subr.bf16.mxu0 0
  %179 = vmatpush2.bf16.msra.mxu0 %v139
  %180 = vmatprep.subr.bf16.mxu0 0
  %181 = vmatpush2.bf16.msra.mxu0 %v138
  %182 = vmatprep.subr.bf16.mxu0 0
  %183 = vmatpush2.bf16.msra.mxu0 %v137
  %184 = vmatprep.subr.bf16.mxu0 0
  %185 = vmatpush2.bf16.msra.mxu0 %v136
  %186 = vmatprep.subr.bf16.mxu0 0
  %187 = vmatpush2.bf16.msra.mxu0 %v135
  %188 = vmatprep.subr.bf16.mxu0 0
  %189 = vmatpush2.bf16.msra.mxu0 %v134
  %190 = vmatprep.mubr.bf16.mxu0 %v59
  %191 = vmatmul.mubr.bf16.gmra.mxu0 %v58
  %v192 = vpop.f32.mrf.mxu0
  %v193 = vadd.f32 0.0, %v192
  %v194 = vpop.f32.mrf.mxu0
  %v195 = vpop.f32.mrf.mxu0
  %v196 = vpop.f32.mrf.mxu0
  %197 = vdwg.mxu0
  %v198 = vadd.f32 %v21, %v193
  %vm199 = vcmask 31744
  %200 = vst.msk [vmem:[#allocation2] sm:$0xff] %vm199, %v198
  // Predicated region
  $region18: #{tpu_custom_call.1} parent=0 // pred_check
    %p201 = pneg %p15
  $region19: #{tpu_custom_call.1} parent=0 // pred_check_branch
    %203 = sbr.rel (%p201) target = $region21
  $region20: #{tpu_custom_call.1} parent=0 // pred_region
    %v204 = vld [vmem:[#allocation2] sm:$0xff]
    %v205 = vld [vmem:[%s2] sm:$0x1]
    %v207 = vlaneseq
    %v208 = vshrl.u32 %v207, 7
    %v209 = vsub.s32 0, %v208
    %v210 = vrot.slane %v205, %v209
    %v212 = vadd.f32 %v204, %v210
    %213 = vst.msk [vmem:[%s3] sm:$0xff] %vm199, %v212
  $region21: #{tpu_custom_call.1} parent=0 // pred_fallthru
    _
  // Predicated region
  $region22: #{tpu_custom_call.1} parent=0 // pred_check
    _
  $region23: #{tpu_custom_call.1} parent=0 // pred_check_branch
    %215 = sbr.rel (0) target = $region25
  $region24: #{tpu_custom_call.1} parent=0 // pred_region
    _
  $region25: #{tpu_custom_call.1} parent=0 // pred_fallthru
    _
  // Predicated region
  $region26: #{tpu_custom_call.1} parent=0 // pred_check
    _
  $region27: #{tpu_custom_call.1} parent=0 // pred_check_branch
    %217 = sbr.rel (0) target = $region29
  $region28: #{tpu_custom_call.1} parent=0 // pred_region
    _
  $region29: #{tpu_custom_call.1} parent=0 // pred_fallthru
    _

</llo_original>
